<compile_context>
chip_gen: v7x
topology: tpu7x:2x2x1
jax: 0.10.0
libtpu: 0.0.40
codegen_flags: <defaults>
</compile_context>

<pallas_src>
import functools

import jax
import jax.numpy as jnp
from jax.experimental import pallas as pl
from jax.experimental.pallas import tpu as pltpu


# ---------------------------------------------------------------------------
# Kernel
# ---------------------------------------------------------------------------
def _attention_kernel(hproj_ref, enc_ref, we_ref, v_ref, out_ref,
                      *, S, mm_dtype, act_dtype):
    """One batch-tile of the seq2seq attention forward.

    hproj_ref: (TB, D)     f32   hidden @ Wh^T + bias (hoisted to XLA, tiny)
    enc_ref:   (TB*S, E)   producer dtype; cast to mm_dtype in VMEM
    we_ref:    (E, D)      mm_dtype (encoder half of the attn weight)
    v_ref:     (1, D)      f32    scoring row vector
    out_ref:   (TB, S)     f32    softmax attention weights, S on the lane axis
    """
    TB = out_ref.shape[0]
    D = we_ref.shape[1]
    rows = enc_ref.shape[0]                # TB * S

    # Cast the encoder block to the MXU dtype *in VMEM* — no extra HBM pass.
    enc = enc_ref[...]
    if enc.dtype != mm_dtype:
        enc = enc.astype(mm_dtype)

    # One lane-dense MXU pass over all TB*S rows, f32 accumulation.
    proj = jnp.dot(enc, we_ref[...], preferred_element_type=jnp.float32)   # (rows, D)

    hproj = hproj_ref[...]                                                 # (TB, D) f32
    v_row = v_ref[...]                                                     # (1, D)  f32

    if S % 8 == 0:
        # Free reshape: S is a multiple of the sublane width.
        e_in = proj.reshape(TB, S, D) + hproj[:, None, :]                  # f32
        energy = jnp.tanh(e_in.astype(act_dtype))                          # (TB, S, D)
        prod = energy * v_row.reshape(1, 1, D).astype(act_dtype)
        scores = jnp.sum(prod.astype(jnp.float32), axis=-1)                # (TB, S)
    else:
        # Stay 2-D: broadcast hproj rows to (rows, D) with a tiny one-hot MXU
        # matmul instead of relayouting the big energy tensor (S not mult. of 8).
        rb = jax.lax.broadcasted_iota(jnp.int32, (rows, TB), 0) // S
        cb = jax.lax.broadcasted_iota(jnp.int32, (rows, TB), 1)
        sel = (rb == cb).astype(jnp.float32)                               # (rows, TB)
        hb = jnp.dot(sel, hproj, preferred_element_type=jnp.float32)       # (rows, D)
        energy = jnp.tanh((proj + hb).astype(act_dtype))                   # (rows, D)
        prod = energy * v_row.astype(act_dtype)
        sflat = jnp.sum(prod.astype(jnp.float32), axis=-1, keepdims=True)  # (rows, 1)
        scores = sflat.reshape(TB, S)                                      # tiny relayout

    # Softmax over src_len (the lane axis), f32 throughout.
    m = jnp.max(scores, axis=-1, keepdims=True)
    p = jnp.exp(scores - m)
    denom = jnp.sum(p, axis=-1, keepdims=True)
    out_ref[...] = (p * pl.reciprocal(denom, approx=True)).astype(out_ref.dtype)


# ---------------------------------------------------------------------------
# Chip / VMEM planning
# ---------------------------------------------------------------------------
def _chip_flavor():
    try:
        kind = jax.devices()[0].device_kind.lower()
    except Exception:
        kind = ""
    if "v7" in kind:
        return "v7x"
    if "v6" in kind:
        return "v6e"
    if "v5e" in kind or ("v5" in kind and "lite" in kind):
        return "v5e"
    return "other"


def _vmem_plan(flavor):
    """(vmem_limit_bytes, per-step tile budget) per chip generation."""
    if flavor == "v7x":
        limit = 48 << 20          # 64 MiB physical per TC
    elif flavor in ("v6e", "v5e"):
        limit = 96 << 20          # 128 MiB physical; raise the scoped default
    else:
        limit = 48 << 20          # conservative for unknown chips
    budget = int(limit * 0.70)    # headroom for compiler scratch / regalloc
    return limit, budget


def _pick_batch_tile(B, S, E, D, mm_bytes, budget_bytes):
    """Largest legal batch tile whose *full* per-step VMEM footprint fits.

    Budgets: double-buffered f32 enc block, its in-VMEM mm-dtype cast copy,
    ~3 live (TB*S, D) f32 temporaries (proj / hidden-bcast / energy·v),
    the small h_proj / out blocks, plus single-buffered We and v.
    Prefers >= 2 grid steps (v7x has 2 TensorCores; also enables pipelining).
    """
    def step_bytes(tb):
        rows = tb * S
        b = rows * E * 4 * 2                    # enc block (f32), double-buffered
        if mm_bytes < 4:
            b += rows * E * mm_bytes            # in-VMEM cast copy for the MXU
        b += 3 * rows * D * 4                   # f32 intermediates
        b += tb * D * 4 * 2 + tb * S * 4 * 2    # h_proj + out blocks
        b += E * D * mm_bytes + D * 4           # We (single-buffered) + v
        return b

    valid = [tb for tb in range(1, B + 1)
             if B % tb == 0 and (tb % 8 == 0 or tb == B)]
    fitting = [tb for tb in valid if step_bytes(tb) <= budget_bytes]
    multi = [tb for tb in fitting if B // tb >= 2]
    if multi:
        return max(multi)
    if fitting:
        return max(fitting)
    # TODO(synk): add an S-tiling grid axis with an online/two-pass softmax for
    # the small-B / very-long-S regime; for now take the smallest legal tile.
    return min(valid)


# ---------------------------------------------------------------------------
# pallas_call builder + wrapper
# ---------------------------------------------------------------------------
def _pallas_attention(h_proj, enc_flat, We, v_row, *, kernel, B, S, E, D, TB,
                      vmem_limit, single_buffer_consts):
    def const_spec(shape):
        if single_buffer_consts:
            return pl.BlockSpec(shape, lambda b: (0,) * len(shape),
                                pipeline_mode=pl.Buffered(1))
        return pl.BlockSpec(shape, lambda b: (0,) * len(shape))

    return pl.pallas_call(
        kernel,
        out_shape=jax.ShapeDtypeStruct((B, S), jnp.float32),
        grid_spec=pltpu.PrefetchScalarGridSpec(
            num_scalar_prefetch=0,
            grid=(B // TB,),
            in_specs=[
                pl.BlockSpec((TB, D), lambda b: (b, 0)),        # h_proj
                pl.BlockSpec((TB * S, E), lambda b: (b, 0)),    # enc rows (f32)
                const_spec((E, D)),                             # We (constant)
                const_spec((1, D)),                             # v  (constant)
            ],
            out_specs=pl.BlockSpec((TB, S), lambda b: (b, 0)),  # lane-dense out
        ),
        compiler_params=pltpu.CompilerParams(
            dimension_semantics=("parallel",),
            vmem_limit_bytes=vmem_limit),
    )(h_proj, enc_flat, We, v_row)


def attention_forward(hidden, encoder_outputs, W_attn, b_attn, v_weight,
                      matmul_dtype=jnp.bfloat16, act_dtype=None):
    """
    hidden:          (B, D)     float32
    encoder_outputs: (B, S, E)  float32 (any dtype; cast to matmul_dtype in VMEM)
    W_attn:          (D, E + D) torch nn.Linear(enc+dec, dec).weight layout
    b_attn:          (D,)
    v_weight:        (1, D)     torch nn.Linear(dec, 1, bias=False).weight
    returns:         (B, S) softmax attention weights (float32)
    """
    B, S, E = encoder_outputs.shape
    D = hidden.shape[1]

    flavor = _chip_flavor()
    vmem_limit, budget = _vmem_plan(flavor)
    if act_dtype is None:
        # bf16 tanh / v-dot only where the VPU/EUP support bf16.
        act_dtype = (jnp.bfloat16
                     if (flavor in ("v6e", "v7x") and matmul_dtype == jnp.bfloat16)
                     else jnp.float32)

    # torch.cat((hidden, encoder_outputs), -1): hidden occupies the FIRST D
    # input columns.  Hoist the tiny hidden projection + bias out of the kernel.
    h_proj = (hidden.astype(jnp.float32)
              @ jnp.transpose(W_attn[:, :D]).astype(jnp.float32)
              + b_attn.astype(jnp.float32))                        # (B, D) f32
    We = jnp.transpose(W_attn[:, D:]).astype(matmul_dtype)         # (E, D)
    v_row = v_weight.reshape(1, D).astype(jnp.float32)             # (1, D)

    # Pure metadata reshape; encoder_outputs keeps its dtype (no extra HBM pass).
    enc_flat = encoder_outputs.reshape(B * S, E)                   # (B*S, E)

    mm_bytes = jnp.dtype(matmul_dtype).itemsize
    TB = _pick_batch_tile(B, S, E, D, mm_bytes, budget)

    kernel = functools.partial(_attention_kernel, S=S,
                               mm_dtype=matmul_dtype, act_dtype=act_dtype)
    common = dict(kernel=kernel, B=B, S=S, E=E, D=D, TB=TB, vmem_limit=vmem_limit)

    try:
        return _pallas_attention(h_proj, enc_flat, We, v_row,
                                 single_buffer_consts=True, **common)
    except Exception:
        # Older JAX builds may reject pipeline_mode=Buffered(1); retry without.
        return _pallas_attention(h_proj, enc_flat, We, v_row,
                                 single_buffer_consts=False, **common)


# ---------------------------------------------------------------------------
# Pure-JAX reference (matches the PyTorch forward exactly)
# ---------------------------------------------------------------------------
def _reference(hidden, encoder_outputs, W_attn, b_attn, v_weight):
    B, S, E = encoder_outputs.shape
    D = hidden.shape[1]
    h_rep = jnp.broadcast_to(hidden[:, None, :], (B, S, D))
    cat = jnp.concatenate([h_rep, encoder_outputs], axis=-1)            # (B, S, D+E)
    energy = jnp.tanh(jnp.einsum("bsf,df->bsd", cat, W_attn) + b_attn)
    attention = jnp.einsum("bsd,od->bso", energy, v_weight)[..., 0]     # (B, S)
    return jax.nn.softmax(attention, axis=1)


if __name__ == "__main__":
    # Small, deterministic example shapes.
    B = 2          # batch
    S = 8          # src_len
    ENC = 32       # enc_hid_dim
    DEC = 32       # dec_hid_dim

    key = jax.random.PRNGKey(0)
    k_h, k_e, k_w, k_b, k_v = jax.random.split(key, 5)

    hidden = jax.random.normal(k_h, (B, DEC), dtype=jnp.float32)
    encoder_outputs = jax.random.normal(k_e, (B, S, ENC), dtype=jnp.float32)

    fan_in_attn = ENC + DEC
    bound_attn = 1.0 / jnp.sqrt(fan_in_attn)
    W_attn = jax.random.uniform(k_w, (DEC, ENC + DEC), jnp.float32,
                                -bound_attn, bound_attn)
    b_attn = jax.random.uniform(k_b, (DEC,), jnp.float32,
                                -bound_attn, bound_attn)
    bound_v = 1.0 / jnp.sqrt(DEC)
    v_weight = jax.random.uniform(k_v, (1, DEC), jnp.float32, -bound_v, bound_v)

    ref = _reference(hidden, encoder_outputs, W_attn, b_attn, v_weight)

    # f32 operand path: only reassociation + EUP-approx reciprocal differences.
    out_f32 = attention_forward(hidden, encoder_outputs, W_attn, b_attn,
                                v_weight, matmul_dtype=jnp.float32)
    out_f32 = jax.block_until_ready(out_f32)
    assert out_f32.shape == (B, S)
    assert jnp.allclose(out_f32, ref, atol=2e-3, rtol=2e-3), "f32 path mismatch"

    # Default path: bf16 MXU everywhere; bf16 tanh/v-dot on v6e/v7x, f32 elsewhere.
    out_bf16 = attention_forward(hidden, encoder_outputs, W_attn, b_attn,
                                 v_weight)
    out_bf16 = jax.block_until_ready(out_bf16)
    assert out_bf16.shape == (B, S)
    assert jnp.allclose(out_bf16, ref, atol=2e-2, rtol=2e-2), "bf16 path mismatch"

    print("KERNEL_OK")
</pallas_src>

<mosaic_0001>
module attributes {stable_mosaic.version = 11 : i64} {
  func.func @_attention_kernel(%arg0: i32, %arg1: memref<2x32xf32, #tpu.memory_space<vmem>>, %arg2: memref<16x32xf32, #tpu.memory_space<vmem>>, %arg3: memref<32x32xf32, #tpu.memory_space<vmem>>, %arg4: memref<1x32xf32, #tpu.memory_space<vmem>>, %arg5: memref<2x8xf32, #tpu.memory_space<vmem>>) attributes {dimension_semantics = [#tpu.dimension_semantics<parallel>], iteration_bounds = array<i64: 1>, scalar_prefetch = 0 : i64, scratch_operands = 0 : i64, tpu.core_type = #tpu.core_type<tc>, window_params = [{transform_indices = @transform_0, window_bounds = array<i64: 2, 32>}, {transform_indices = @transform_1, window_bounds = array<i64: 16, 32>}, {pipeline_mode = #tpu.pipeline_mode<synchronous>, transform_indices = @transform_2, window_bounds = array<i64: 32, 32>}, {pipeline_mode = #tpu.pipeline_mode<synchronous>, transform_indices = @transform_3, window_bounds = array<i64: 1, 32>}, {transform_indices = @transform_4, window_bounds = array<i64: 2, 8>}]} {
    %c0 = arith.constant 0 : index
    %c0_0 = arith.constant 0 : index
    %0 = vector.load %arg2[%c0, %c0_0] : memref<16x32xf32, #tpu.memory_space<vmem>>, vector<16x32xf32>
    %c0_1 = arith.constant 0 : index
    %c0_2 = arith.constant 0 : index
    %1 = vector.load %arg3[%c0_1, %c0_2] : memref<32x32xf32, #tpu.memory_space<vmem>>, vector<32x32xf32>
    %cst = arith.constant dense<0.000000e+00> : vector<16x32xf32>
    %2 = tpu.matmul %0, %1, %cst {dimension_numbers = #tpu.dot_dimension_numbers<[1], [0], [0], [1], [0, 0, 1, 1], [], []>} : vector<16x32xf32>, vector<32x32xf32>, vector<16x32xf32> -> vector<16x32xf32>
    %c0_3 = arith.constant 0 : index
    %c0_4 = arith.constant 0 : index
    %3 = vector.load %arg1[%c0_3, %c0_4] : memref<2x32xf32, #tpu.memory_space<vmem>>, vector<2x32xf32>
    %c0_5 = arith.constant 0 : index
    %c0_6 = arith.constant 0 : index
    %4 = vector.load %arg4[%c0_5, %c0_6] : memref<1x32xf32, #tpu.memory_space<vmem>>, vector<1x32xf32>
    %5 = vector.shape_cast %2 : vector<16x32xf32> to vector<2x8x32xf32>
    %6 = vector.shape_cast %3 : vector<2x32xf32> to vector<2x1x32xf32>
    %7 = vector.broadcast %6 : vector<2x1x32xf32> to vector<2x8x32xf32>
    %8 = arith.addf %5, %7 : vector<2x8x32xf32>
    %9 = math.tanh %8 : vector<2x8x32xf32>
    %10 = vector.shape_cast %4 : vector<1x32xf32> to vector<1x1x32xf32>
    %11 = vector.broadcast %10 : vector<1x1x32xf32> to vector<2x8x32xf32>
    %12 = arith.mulf %9, %11 : vector<2x8x32xf32>
    %cst_7 = arith.constant dense<0.000000e+00> : vector<2x8xf32>
    %13 = vector.multi_reduction <add>, %12, %cst_7 [2] : vector<2x8x32xf32> to vector<2x8xf32>
    %cst_8 = arith.constant dense<0xFF800000> : vector<2xf32>
    %14 = vector.multi_reduction <maximumf>, %13, %cst_8 [1] : vector<2x8xf32> to vector<2xf32>
    %15 = vector.shape_cast %14 : vector<2xf32> to vector<2x1xf32>
    %16 = vector.broadcast %15 : vector<2x1xf32> to vector<2x8xf32>
    %17 = arith.subf %13, %16 : vector<2x8xf32>
    %18 = math.exp %17 : vector<2x8xf32>
    %cst_9 = arith.constant dense<0.000000e+00> : vector<2xf32>
    %19 = vector.multi_reduction <add>, %18, %cst_9 [1] : vector<2x8xf32> to vector<2xf32>
    %20 = vector.shape_cast %19 : vector<2xf32> to vector<2x1xf32>
    %21 = tpu.reciprocal %20 {approx = true} : vector<2x1xf32> -> vector<2x1xf32>
    %22 = vector.broadcast %21 : vector<2x1xf32> to vector<2x8xf32>
    %23 = arith.mulf %18, %22 : vector<2x8xf32>
    %c0_10 = arith.constant 0 : index
    %c0_11 = arith.constant 0 : index
    %24 = vector.load %arg5[%c0_10, %c0_11] : memref<2x8xf32, #tpu.memory_space<vmem>>, vector<2x8xf32>
    tpu.vector_store %arg5[%c0_10, %c0_11], %23 {strides = array<i32>} : memref<2x8xf32, #tpu.memory_space<vmem>>, vector<2x8xf32>,
    return
  }
  func.func @transform_0(%arg0: i32) -> (i32, i32) {
    %c0_i32 = arith.constant 0 : i32
    %c0_i32_0 = arith.constant 0 : i32
    return %arg0, %c0_i32 : i32, i32
  }
  func.func @transform_1(%arg0: i32) -> (i32, i32) {
    %c0_i32 = arith.constant 0 : i32
    %c0_i32_0 = arith.constant 0 : i32
    return %arg0, %c0_i32 : i32, i32
  }
  func.func @transform_2(%arg0: i32) -> (i32, i32) {
    %c0_i32 = arith.constant 0 : i32
    %c0_i32_0 = arith.constant 0 : i32
    %c0_i32_1 = arith.constant 0 : i32
    return %c0_i32, %c0_i32_0 : i32, i32
  }
  func.func @transform_3(%arg0: i32) -> (i32, i32) {
    %c0_i32 = arith.constant 0 : i32
    %c0_i32_0 = arith.constant 0 : i32
    %c0_i32_1 = arith.constant 0 : i32
    return %c0_i32, %c0_i32_0 : i32, i32
  }
  func.func @transform_4(%arg0: i32) -> (i32, i32) {
    %c0_i32 = arith.constant 0 : i32
    %c0_i32_0 = arith.constant 0 : i32
    return %arg0, %c0_i32 : i32, i32
  }
}

module attributes {stable_mosaic.version = 11 : i64} {
  func.func @_attention_kernel(%arg0: i32, %arg1: memref<2x32xf32, #tpu.memory_space<vmem>>, %arg2: memref<16x32xf32, #tpu.memory_space<vmem>>, %arg3: memref<32x32xf32, #tpu.memory_space<vmem>>, %arg4: memref<1x32xf32, #tpu.memory_space<vmem>>, %arg5: memref<2x8xf32, #tpu.memory_space<vmem>>) attributes {dimension_semantics = [#tpu.dimension_semantics<parallel>], iteration_bounds = array<i64: 1>, scalar_prefetch = 0 : i64, scratch_operands = 0 : i64, tpu.core_type = #tpu.core_type<tc>, window_params = [{transform_indices = @transform_0, window_bounds = array<i64: 2, 32>}, {transform_indices = @transform_1, window_bounds = array<i64: 16, 32>}, {pipeline_mode = #tpu.pipeline_mode<synchronous>, transform_indices = @transform_2, window_bounds = array<i64: 32, 32>}, {pipeline_mode = #tpu.pipeline_mode<synchronous>, transform_indices = @transform_3, window_bounds = array<i64: 1, 32>}, {transform_indices = @transform_4, window_bounds = array<i64: 2, 8>}]} {
    %c0 = arith.constant 0 : index
    %c0_0 = arith.constant 0 : index
    %0 = vector.load %arg2[%c0, %c0_0] : memref<16x32xf32, #tpu.memory_space<vmem>>, vector<16x32xf32>
    %c0_1 = arith.constant 0 : index
    %c0_2 = arith.constant 0 : index
    %1 = vector.load %arg3[%c0_1, %c0_2] : memref<32x32xf32, #tpu.memory_space<vmem>>, vector<32x32xf32>
    %cst = arith.constant dense<0.000000e+00> : vector<16x32xf32>
    %2 = tpu.matmul %0, %1, %cst {dimension_numbers = #tpu.dot_dimension_numbers<[1], [0], [0], [1], [0, 0, 1, 1], [], []>} : vector<16x32xf32>, vector<32x32xf32>, vector<16x32xf32> -> vector<16x32xf32>
    %c0_3 = arith.constant 0 : index
    %c0_4 = arith.constant 0 : index
    %3 = vector.load %arg1[%c0_3, %c0_4] : memref<2x32xf32, #tpu.memory_space<vmem>>, vector<2x32xf32>
    %c0_5 = arith.constant 0 : index
    %c0_6 = arith.constant 0 : index
    %4 = vector.load %arg4[%c0_5, %c0_6] : memref<1x32xf32, #tpu.memory_space<vmem>>, vector<1x32xf32>
    %5 = vector.shape_cast %2 : vector<16x32xf32> to vector<2x8x32xf32>
    %6 = vector.shape_cast %3 : vector<2x32xf32> to vector<2x1x32xf32>
    %7 = vector.broadcast %6 : vector<2x1x32xf32> to vector<2x8x32xf32>
    %8 = arith.addf %5, %7 : vector<2x8x32xf32>
    %9 = math.tanh %8 : vector<2x8x32xf32>
    %10 = vector.shape_cast %4 : vector<1x32xf32> to vector<1x1x32xf32>
    %11 = vector.broadcast %10 : vector<1x1x32xf32> to vector<2x8x32xf32>
    %12 = arith.mulf %9, %11 : vector<2x8x32xf32>
    %cst_7 = arith.constant dense<0.000000e+00> : vector<2x8xf32>
    %13 = vector.multi_reduction <add>, %12, %cst_7 [2] : vector<2x8x32xf32> to vector<2x8xf32>
    %cst_8 = arith.constant dense<0xFF800000> : vector<2xf32>
    %14 = vector.multi_reduction <maximumf>, %13, %cst_8 [1] : vector<2x8xf32> to vector<2xf32>
    %15 = vector.shape_cast %14 : vector<2xf32> to vector<2x1xf32>
    %16 = vector.broadcast %15 : vector<2x1xf32> to vector<2x8xf32>
    %17 = arith.subf %13, %16 : vector<2x8xf32>
    %18 = math.exp %17 : vector<2x8xf32>
    %cst_9 = arith.constant dense<0.000000e+00> : vector<2xf32>
    %19 = vector.multi_reduction <add>, %18, %cst_9 [1] : vector<2x8xf32> to vector<2xf32>
    %20 = vector.shape_cast %19 : vector<2xf32> to vector<2x1xf32>
    %21 = tpu.reciprocal %20 {approx = true} : vector<2x1xf32> -> vector<2x1xf32>
    %22 = vector.broadcast %21 : vector<2x1xf32> to vector<2x8xf32>
    %23 = arith.mulf %18, %22 : vector<2x8xf32>
    %c0_10 = arith.constant 0 : index
    %c0_11 = arith.constant 0 : index
    %24 = vector.load %arg5[%c0_10, %c0_11] : memref<2x8xf32, #tpu.memory_space<vmem>>, vector<2x8xf32>
    tpu.vector_store %arg5[%c0_10, %c0_11], %23 {strides = array<i32>} : memref<2x8xf32, #tpu.memory_space<vmem>>, vector<2x8xf32>,
    return
  }
  func.func @transform_0(%arg0: i32) -> (i32, i32) {
    %c0_i32 = arith.constant 0 : i32
    %c0_i32_0 = arith.constant 0 : i32
    return %arg0, %c0_i32 : i32, i32
  }
  func.func @transform_1(%arg0: i32) -> (i32, i32) {
    %c0_i32 = arith.constant 0 : i32
    %c0_i32_0 = arith.constant 0 : i32
    return %arg0, %c0_i32 : i32, i32
  }
  func.func @transform_2(%arg0: i32) -> (i32, i32) {
    %c0_i32 = arith.constant 0 : i32
    %c0_i32_0 = arith.constant 0 : i32
    %c0_i32_1 = arith.constant 0 : i32
    return %c0_i32, %c0_i32_0 : i32, i32
  }
  func.func @transform_3(%arg0: i32) -> (i32, i32) {
    %c0_i32 = arith.constant 0 : i32
    %c0_i32_0 = arith.constant 0 : i32
    %c0_i32_1 = arith.constant 0 : i32
    return %c0_i32, %c0_i32_0 : i32, i32
  }
  func.func @transform_4(%arg0: i32) -> (i32, i32) {
    %c0_i32 = arith.constant 0 : i32
    %c0_i32_0 = arith.constant 0 : i32
    return %arg0, %c0_i32 : i32, i32
  }
}

</mosaic_0001>

<llo_original>
// kernel: tpu_custom_call.1
$region0: #{tpu_custom_call.1}
  #allocation0 [shape = 'u32[]', space=smem, size = 0x4, offset = 0x4, fixed_abs, tag = 'smem constant byte address 0x4 - core index']
  #allocation1 [shape = 'u32[144,128]{1,0:T(1,128)}', space=vmem, size = 0x12000, scoped, tag = 'internal scratch']
  %s0 = inlined_call_operand.hbm [shape: f32[2,32], index: 0, kind: input, shape index: {}]
  %s1 = inlined_call_operand.hbm [shape: f32[16,32], index: 1, kind: input, shape index: {}]
  %s2 = inlined_call_operand.hbm [shape: f32[32,32], index: 2, kind: input, shape index: {}]
  %s3 = inlined_call_operand.vmem [shape: f32[1,32], index: 3, kind: input, shape index: {}]
  %s4 = inlined_call_operand.hbm [shape: f32[2,8], index: 4, kind: output, shape index: {}]
  %s5 = sld [smem:[#allocation0]]
  $region38: #{tpu_custom_call.1} parent=0
    _
  %s7 = ssub.s32 1, %s5
  %s8 = scalar_select 0, %s7, %s5
  $region1: #{tpu_custom_call.1} parent=0
    #allocation2 [shape = 'u8[1024]{0}', space=vmem, size = 0x400, scoped, tag = 'input window, operand 0, single buffered']
    #allocation3 [shape = 's32[1]{0}', space=sflag, size = 0x4, scoped, tag = 'scoped memory for tpu_custom_call.1']
    #allocation4 [shape = 's32[1]{0}', space=sflag, size = 0x4, scoped, tag = 'scoped memory for tpu_custom_call.1']
    #allocation5 [shape = 'u8[8192]{0}', space=vmem, size = 0x2000, scoped, tag = 'input window, operand 1, single buffered']
    #allocation6 [shape = 's32[1]{0}', space=sflag, size = 0x4, scoped, tag = 'scoped memory for tpu_custom_call.1']
    #allocation7 [shape = 'u8[16384]{0}', space=vmem, size = 0x4000, scoped, tag = 'input window, operand 2, single buffered']
    #allocation8 [shape = 'u8[1024]{0}', space=vmem, size = 0x400, scoped, tag = 'output window, operand 0, single buffered']
    %9 = vsyncpa [#allocation3], 0
    %10 = vsyncpa [#allocation6], 0
    %11 = vsyncpa [#allocation4], 0
    // Predicated region
    $region2: #{tpu_custom_call.1} parent=1 // pred_check
      _
    $region3: #{tpu_custom_call.1} parent=1 // pred_check_branch
      %13 = sbr.rel (0) target = $region5
    $region4: #{tpu_custom_call.1} parent=1 // pred_region
      %s15 = ssub.s32 32, 32
      %16 = vsyncadd [#allocation3], %s15
      %s18 = sshll.u32 [#allocation2], 4
      %s19 = int_to_ptr.vmem [resolvable:$true] %s18
      %21 = dma.hbm_to_vmem [thread:$0]  %s0, 32, %s19, [#allocation3]
    $region5: #{tpu_custom_call.1} parent=1 // pred_fallthru
      _
    // Predicated region
    $region6: #{tpu_custom_call.1} parent=1 // pred_check
      _
    $region7: #{tpu_custom_call.1} parent=1 // pred_check_branch
      %23 = sbr.rel (0) target = $region9
    $region8: #{tpu_custom_call.1} parent=1 // pred_region
      %s25 = ssub.s32 256, 256
      %26 = vsyncadd [#allocation6], %s25
      %s27 = sshll.u32 [#allocation5], 4
      %s28 = int_to_ptr.vmem [resolvable:$true] %s27
      %33 = dma.hbm_to_vmem [thread:$0]  %s1, 256, %s28, [#allocation6], 128, 128, 8
    $region9: #{tpu_custom_call.1} parent=1 // pred_fallthru
      _
    // Predicated region
    $region10: #{tpu_custom_call.1} parent=1 // pred_check
      _
    $region11: #{tpu_custom_call.1} parent=1 // pred_check_branch
      %35 = sbr.rel (0) target = $region13
    $region12: #{tpu_custom_call.1} parent=1 // pred_region
      %s37 = ssub.s32 512, 512
      %38 = vsyncadd [#allocation6], %s37
      %s39 = sshll.u32 [#allocation7], 4
      %s40 = int_to_ptr.vmem [resolvable:$true] %s39
      %45 = dma.hbm_to_vmem [thread:$0]  %s2, 512, %s40, [#allocation6], 128, 128, 8
    $region13: #{tpu_custom_call.1} parent=1 // pred_fallthru
      _
    // Predicated region
    $region14: #{tpu_custom_call.1} parent=1 // pred_check
      _
    $region15: #{tpu_custom_call.1} parent=1 // pred_check_branch
      %47 = sbr.rel (0) target = $region17
    $region16: #{tpu_custom_call.1} parent=1 // pred_region
      _
    $region17: #{tpu_custom_call.1} parent=1 // pred_fallthru
      _
    // Predicated region
    $region18: #{tpu_custom_call.1} parent=1 // pred_check
      _
    $region19: #{tpu_custom_call.1} parent=1 // pred_check_branch
      %49 = sbr.rel (0) target = $region21
    $region20: #{tpu_custom_call.1} parent=1 // pred_region
      %50 = dma.done [#allocation3], 32
    $region21: #{tpu_custom_call.1} parent=1 // pred_fallthru
      _
    // Predicated region
    $region22: #{tpu_custom_call.1} parent=1 // pred_check
      _
    $region23: #{tpu_custom_call.1} parent=1 // pred_check_branch
      %52 = sbr.rel (0) target = $region25
    $region24: #{tpu_custom_call.1} parent=1 // pred_region
      %53 = dma.done [#allocation6], 256
    $region25: #{tpu_custom_call.1} parent=1 // pred_fallthru
      _
    // Predicated region
    $region26: #{tpu_custom_call.1} parent=1 // pred_check
      _
    $region27: #{tpu_custom_call.1} parent=1 // pred_check_branch
      %55 = sbr.rel (0) target = $region29
    $region28: #{tpu_custom_call.1} parent=1 // pred_region
      %56 = dma.done [#allocation6], 512
    $region29: #{tpu_custom_call.1} parent=1 // pred_fallthru
      _
    %v57 = vld [vmem:[#allocation5] sm:$0xff]
    %v58 = vld [vmem:[#allocation5 + $0x8] sm:$0xff]
    %v59 = vld [vmem:[#allocation7] sm:$0xff]
    %v60 = vld [vmem:[#allocation7 + $0x8] sm:$0xff]
    %v61 = vld [vmem:[#allocation7 + $0x10] sm:$0xff]
    %v62 = vld [vmem:[#allocation7 + $0x18] sm:$0xff]
    %vm63 = vcmask 261120
    %v65 = vsel %vm63, %v57, 0
    %v68 = vsel %vm63, %v58, 0
    %70 = vmatprep.subr.mxu0 0.0
    %71 = vmatpush1.msra.mxu0 %v59
    %72 = vmatprep.subr.mxu0 0.0
    %73 = vmatpush1.msra.mxu0 %v60
    %74 = vmatprep.subr.mxu0 0.0
    %75 = vmatpush1.msra.mxu0 %v61
    %76 = vmatprep.subr.mxu0 0.0
    %77 = vmatpush1.msra.mxu0 %v62
    %78 = vmatprep.subr.mxu0 0.0
    %79 = vmatpush1.msra.mxu0 0.0
    %80 = vmatprep.subr.mxu0 0.0
    %81 = vmatpush1.msra.mxu0 0.0
    %82 = vmatprep.subr.mxu0 0.0
    %83 = vmatpush1.msra.mxu0 0.0
    %84 = vmatprep.subr.mxu0 0.0
    %85 = vmatpush1.msra.mxu0 0.0
    %86 = vmatprep.subr.mxu0 0.0
    %87 = vmatpush1.msra.mxu0 0.0
    %88 = vmatprep.subr.mxu0 0.0
    %89 = vmatpush1.msra.mxu0 0.0
    %90 = vmatprep.subr.mxu0 0.0
    %91 = vmatpush1.msra.mxu0 0.0
    %92 = vmatprep.subr.mxu0 0.0
    %93 = vmatpush1.msra.mxu0 0.0
    %94 = vmatprep.subr.mxu0 0.0
    %95 = vmatpush1.msra.mxu0 0.0
    %96 = vmatprep.subr.mxu0 0.0
    %97 = vmatpush1.msra.mxu0 0.0
    %98 = vmatprep.subr.mxu0 0.0
    %99 = vmatpush1.msra.mxu0 0.0
    %100 = vmatprep.subr.mxu0 0.0
    %101 = vmatpush1.msra.mxu0 0.0
    %102 = vmatprep.subr.mxu0 0.0
    %103 = vmatpush1.msra.mxu0 0.0
    %104 = vmatprep.subr.mxu0 0.0
    %105 = vmatpush1.msra.mxu0 0.0
    %106 = vmatprep.subr.mxu0 0.0
    %107 = vmatpush1.msra.mxu0 0.0
    %108 = vmatprep.subr.mxu0 0.0
    %109 = vmatpush1.msra.mxu0 0.0
    %110 = vmatprep.subr.mxu0 0.0
    %111 = vmatpush1.msra.mxu0 0.0
    %112 = vmatprep.subr.mxu0 0.0
    %113 = vmatpush1.msra.mxu0 0.0
    %114 = vmatprep.subr.mxu0 0.0
    %115 = vmatpush1.msra.mxu0 0.0
    %116 = vmatprep.subr.mxu0 0.0
    %117 = vmatpush1.msra.mxu0 0.0
    %118 = vmatprep.subr.mxu0 0.0
    %119 = vmatpush1.msra.mxu0 0.0
    %120 = vmatprep.subr.mxu0 0.0
    %121 = vmatpush1.msra.mxu0 0.0
    %122 = vmatprep.subr.mxu0 0.0
    %123 = vmatpush1.msra.mxu0 0.0
    %124 = vmatprep.subr.mxu0 0.0
    %125 = vmatpush1.msra.mxu0 0.0
    %126 = vmatprep.subr.mxu0 0.0
    %127 = vmatpush1.msra.mxu0 0.0
    %128 = vmatprep.subr.mxu0 0.0
    %129 = vmatpush1.msra.mxu0 0.0
    %130 = vmatprep.subr.mxu0 0.0
    %131 = vmatpush1.msra.mxu0 0.0
    %132 = vmatprep.subr.mxu0 0.0
    %133 = vmatpush1.msra.mxu0 0.0
    %134 = vmatprep.mubr.f32.mxu0 0.0
    %135 = vmatmul.mubr.f32.gmra.mrb[0].mxu0 %v65
    %v136 = vpop.f32.mrb[0].mxu0
    %v137 = vadd.f32 0.0, %v136
    %v138 = vpop.f32.mrb[0].mxu0
    %139 = vmatprep.mubr.f32.mxu0 0.0
    %140 = vmatmul.mubr.f32.gmra.mrb[0].mxu0 %v68
    %v141 = vpop.f32.mrb[0].mxu0
    %v142 = vadd.f32 0.0, %v141
    %v143 = vpop.f32.mrb[0].mxu0
    %144 = vdwg.mxu0
    %v145 = vld [vmem:[#allocation2] sm:$0x3]
    %v146 = vld [vmem:[%s3] sm:$0x1]
    %v149 = vunpack.c.l.s4 1966171168
    %v150 = vunpack.c.0.s8 %v149
    %v151 = vlaneseq
    %v152 = vshrl.u32 %v151, 7
    %v153 = vsub.s32 %v150, %v152
    %v154 = vrot.slane %v145, %v153
    %v155 = vcombine.high %v154, %v154
    %v157 = vunpack.c.l.s4 1966171168
    %v158 = vunpack.c.0.s8 %v157
    %v159 = vlaneseq
    %v160 = vshrl.u32 %v159, 7
    %v161 = vsub.s32 %v158, %v160
    %v162 = vrot.slane %v154, %v161
    %v164 = vunpack.c.l.s4 1966171168
    %v165 = vunpack.c.0.s8 %v164
    %v166 = vlaneseq
    %v167 = vshrl.u32 %v166, 7
    %v168 = vsub.s32 %v165, %v167
    %v169 = vrot.slane %v155, %v168
    %v170 = vlaneseq
    %v171 = vshrl.u32 %v170, 7
    %v172 = vsub.s32 0, %v171
    %v173 = vrot.slane %v162, %v172
    %v174 = vlaneseq
    %v175 = vshrl.u32 %v174, 7
    %v176 = vsub.s32 0, %v175
    %v177 = vrot.slane %v169, %v176
    %v180 = vadd.f32 %v137, %v173
    %v181 = vadd.f32 %v142, %v177
    %v182 = vtanh.pop %v180
    %v183 = vtanh.pop %v181
    %v185 = vlaneseq
    %v186 = vshrl.u32 %v185, 7
    %v187 = vsub.s32 0, %v186
    %v188 = vrot.slane %v146, %v187
    %v190 = vmul.f32 %v182, %v188
    %v191 = vmul.f32 %v183, %v188
    %v192 = vsel %vm63, %v190, 0.0
    %193 = vadd.xlane.f32.xlu0 %v192
    %v194 = vpop.xlane.xlu0 %193
    %v195 = vsel %vm63, %v191, 0.0
    %196 = vadd.xlane.f32.xlu0 %v195
    %v197 = vpop.xlane.xlu0 %196
    %v200 = vlaneseq
    %v201 = vand.u32 %v200, 127
    %v202 = vlaneseq
    %v203 = vshrl.u32 %v202, 7
    %v204 = vsub.s32 %v201, %v203
    %v205 = vrot.slane %v194, %v204
    %v206 = vlaneseq
    %v207 = vshrl.u32 %v206, 7
    %v208 = vsub.s32 %v201, %v207
    %v209 = vrot.slane %v197, %v208
    %vm210 = vcmask 1041409
    %v211 = vsel %vm210, %v209, %v205
    %vm213 = vcmask 58368
    %v214 = vsel %vm213, %v211, -inf
    %215 = vmax.xlane.f32.xlu0 %v214
    %v216 = vpop.xlane.xlu0 %215
    %v218 = vlaneseq
    %v219 = vshrl.u32 %v218, 7
    %v220 = vsub.s32 0, %v219
    %v221 = vrot.slane %v216, %v220
    %v222 = vlaneseq
    %v223 = vshrl.u32 %v222, 7
    %v224 = vsub.s32 1, %v223
    %v225 = vrot.slane %v216, %v224
    %v228 = vsub.f32 %v194, %v221
    %v229 = vsub.f32 %v197, %v225
    %v230 = vmul.f32 %v228, 1.442695
    %v231 = vpow.pop %v230
    %v232 = vmul.f32 %v229, 1.442695
    %v233 = vpow.pop %v232
    %236 = vset.pattern.permute.xlu0 0
    %237 = vperm.xlu0 %236, %v231
    %v238 = vpop.permute.xlu0 %237
    %239 = vset.pattern.permute.xlu0 0
    %240 = vperm.xlu0 %239, %v233
    %v241 = vpop.permute.xlu0 %240
    %v242 = vlaneseq
    %v243 = vshrl.u32 %v242, 7
    %v244 = vsub.s32 %v201, %v243
    %v245 = vrot.slane %v238, %v244
    %v246 = vlaneseq
    %v247 = vshrl.u32 %v246, 7
    %v248 = vsub.s32 %v201, %v247
    %v249 = vrot.slane %v241, %v248
    %v250 = vsel %vm210, %v249, %v245
    %v252 = vsel %vm213, %v250, 0.0
    %253 = vadd.xlane.f32.xlu0 %v252
    %v254 = vpop.xlane.xlu0 %253
    %v255 = vrcp.pop %v254
    %v257 = vlaneseq
    %v258 = vshrl.u32 %v257, 7
    %v259 = vsub.s32 0, %v258
    %v260 = vrot.slane %v255, %v259
    %v261 = vlaneseq
    %v262 = vshrl.u32 %v261, 7
    %v263 = vsub.s32 1, %v262
    %v264 = vrot.slane %v255, %v263
    %v267 = vmul.f32 %v231, %v260
    %v268 = vmul.f32 %v233, %v264
    %271 = vset.pattern.permute.xlu0 0
    %272 = vperm.xlu0 %271, %v267
    %v273 = vpop.permute.xlu0 %272
    %274 = vset.pattern.permute.xlu0 0
    %275 = vperm.xlu0 %274, %v268
    %v276 = vpop.permute.xlu0 %275
    %v277 = vlaneseq
    %v278 = vshrl.u32 %v277, 7
    %v279 = vsub.s32 %v201, %v278
    %v280 = vrot.slane %v273, %v279
    %v281 = vlaneseq
    %v282 = vshrl.u32 %v281, 7
    %v283 = vsub.s32 %v201, %v282
    %v284 = vrot.slane %v276, %v283
    %v285 = vsel %vm210, %v284, %v280
    %287 = vst.msk [vmem:[#allocation8] sm:$0x3] %vm213, %v285
    // Predicated region
    $region30: #{tpu_custom_call.1} parent=1 // pred_check
      _
    $region31: #{tpu_custom_call.1} parent=1 // pred_check_branch
      %289 = sbr.rel (0) target = $region33
    $region32: #{tpu_custom_call.1} parent=1 // pred_region
      %s291 = ssub.s32 32, 32
      %292 = vsyncadd [#allocation4], %s291
      %s294 = sshll.u32 [#allocation8], 4
      %s295 = int_to_ptr.vmem [resolvable:$true] %s294
      %297 = dma.vmem_to_hbm [thread:$0]  %s295, 32, %s4, [#allocation4]
    $region33: #{tpu_custom_call.1} parent=1 // pred_fallthru
      _
    // Predicated region
    $region34: #{tpu_custom_call.1} parent=1 // pred_check
      _
    $region35: #{tpu_custom_call.1} parent=1 // pred_check_branch
      %299 = sbr.rel (0) target = $region37
    $region36: #{tpu_custom_call.1} parent=1 // pred_region
      %300 = dma.done [#allocation4], 32
    $region37: #{tpu_custom_call.1} parent=1 // pred_fallthru
      _
    %301 = vsyncpa [#allocation3], 1
    %302 = vsyncpa [#allocation6], 1
    %303 = vsyncpa [#allocation4], 1

// kernel: tpu_custom_call.1
$region0: #{tpu_custom_call.1}
  #allocation0 [shape = 'u32[]', space=smem, size = 0x4, offset = 0x4, fixed_abs, tag = 'smem constant byte address 0x4 - core index']
  #allocation1 [shape = 'u32[144,128]{1,0:T(1,128)}', space=vmem, size = 0x12000, scoped, tag = 'internal scratch']
  %s0 = inlined_call_operand.hbm [shape: f32[2,32], index: 0, kind: input, shape index: {}]
  %s1 = inlined_call_operand.hbm [shape: f32[16,32], index: 1, kind: input, shape index: {}]
  %s2 = inlined_call_operand.hbm [shape: f32[32,32], index: 2, kind: input, shape index: {}]
  %s3 = inlined_call_operand.vmem [shape: f32[1,32], index: 3, kind: input, shape index: {}]
  %s4 = inlined_call_operand.hbm [shape: f32[2,8], index: 4, kind: output, shape index: {}]
  %s5 = sld [smem:[#allocation0]]
  $region38: #{tpu_custom_call.1} parent=0
    _
  %s7 = ssub.s32 1, %s5
  %s8 = scalar_select 0, %s7, %s5
  $region1: #{tpu_custom_call.1} parent=0
    #allocation2 [shape = 'u8[1024]{0}', space=vmem, size = 0x400, scoped, tag = 'input window, operand 0, single buffered']
    #allocation3 [shape = 's32[1]{0}', space=sflag, size = 0x4, scoped, tag = 'scoped memory for tpu_custom_call.1']
    #allocation4 [shape = 's32[1]{0}', space=sflag, size = 0x4, scoped, tag = 'scoped memory for tpu_custom_call.1']
    #allocation5 [shape = 'u8[8192]{0}', space=vmem, size = 0x2000, scoped, tag = 'input window, operand 1, single buffered']
    #allocation6 [shape = 's32[1]{0}', space=sflag, size = 0x4, scoped, tag = 'scoped memory for tpu_custom_call.1']
    #allocation7 [shape = 'u8[16384]{0}', space=vmem, size = 0x4000, scoped, tag = 'input window, operand 2, single buffered']
    #allocation8 [shape = 'u8[1024]{0}', space=vmem, size = 0x400, scoped, tag = 'output window, operand 0, single buffered']
    %9 = vsyncpa [#allocation3], 0
    %10 = vsyncpa [#allocation6], 0
    %11 = vsyncpa [#allocation4], 0
    // Predicated region
    $region2: #{tpu_custom_call.1} parent=1 // pred_check
      _
    $region3: #{tpu_custom_call.1} parent=1 // pred_check_branch
      %13 = sbr.rel (0) target = $region5
    $region4: #{tpu_custom_call.1} parent=1 // pred_region
      %s15 = ssub.s32 32, 32
      %16 = vsyncadd [#allocation3], %s15
      %s18 = sshll.u32 [#allocation2], 4
      %s19 = int_to_ptr.vmem [resolvable:$true] %s18
      %21 = dma.hbm_to_vmem [thread:$0]  %s0, 32, %s19, [#allocation3]
    $region5: #{tpu_custom_call.1} parent=1 // pred_fallthru
      _
    // Predicated region
    $region6: #{tpu_custom_call.1} parent=1 // pred_check
      _
    $region7: #{tpu_custom_call.1} parent=1 // pred_check_branch
      %23 = sbr.rel (0) target = $region9
    $region8: #{tpu_custom_call.1} parent=1 // pred_region
      %s25 = ssub.s32 256, 256
      %26 = vsyncadd [#allocation6], %s25
      %s27 = sshll.u32 [#allocation5], 4
      %s28 = int_to_ptr.vmem [resolvable:$true] %s27
      %33 = dma.hbm_to_vmem [thread:$0]  %s1, 256, %s28, [#allocation6], 128, 128, 8
    $region9: #{tpu_custom_call.1} parent=1 // pred_fallthru
      _
    // Predicated region
    $region10: #{tpu_custom_call.1} parent=1 // pred_check
      _
    $region11: #{tpu_custom_call.1} parent=1 // pred_check_branch
      %35 = sbr.rel (0) target = $region13
    $region12: #{tpu_custom_call.1} parent=1 // pred_region
      %s37 = ssub.s32 512, 512
      %38 = vsyncadd [#allocation6], %s37
      %s39 = sshll.u32 [#allocation7], 4
      %s40 = int_to_ptr.vmem [resolvable:$true] %s39
      %45 = dma.hbm_to_vmem [thread:$0]  %s2, 512, %s40, [#allocation6], 128, 128, 8
    $region13: #{tpu_custom_call.1} parent=1 // pred_fallthru
      _
    // Predicated region
    $region14: #{tpu_custom_call.1} parent=1 // pred_check
      _
    $region15: #{tpu_custom_call.1} parent=1 // pred_check_branch
      %47 = sbr.rel (0) target = $region17
    $region16: #{tpu_custom_call.1} parent=1 // pred_region
      _
    $region17: #{tpu_custom_call.1} parent=1 // pred_fallthru
      _
    // Predicated region
    $region18: #{tpu_custom_call.1} parent=1 // pred_check
      _
    $region19: #{tpu_custom_call.1} parent=1 // pred_check_branch
      %49 = sbr.rel (0) target = $region21
    $region20: #{tpu_custom_call.1} parent=1 // pred_region
      %50 = dma.done [#allocation3], 32
    $region21: #{tpu_custom_call.1} parent=1 // pred_fallthru
      _
    // Predicated region
    $region22: #{tpu_custom_call.1} parent=1 // pred_check
      _
    $region23: #{tpu_custom_call.1} parent=1 // pred_check_branch
      %52 = sbr.rel (0) target = $region25
    $region24: #{tpu_custom_call.1} parent=1 // pred_region
      %53 = dma.done [#allocation6], 256
    $region25: #{tpu_custom_call.1} parent=1 // pred_fallthru
      _
    // Predicated region
    $region26: #{tpu_custom_call.1} parent=1 // pred_check
      _
    $region27: #{tpu_custom_call.1} parent=1 // pred_check_branch
      %55 = sbr.rel (0) target = $region29
    $region28: #{tpu_custom_call.1} parent=1 // pred_region
      %56 = dma.done [#allocation6], 512
    $region29: #{tpu_custom_call.1} parent=1 // pred_fallthru
      _
    %v57 = vld [vmem:[#allocation5] sm:$0xff]
    %v58 = vld [vmem:[#allocation5 + $0x8] sm:$0xff]
    %v59 = vld [vmem:[#allocation7] sm:$0xff]
    %v60 = vld [vmem:[#allocation7 + $0x8] sm:$0xff]
    %v61 = vld [vmem:[#allocation7 + $0x10] sm:$0xff]
    %v62 = vld [vmem:[#allocation7 + $0x18] sm:$0xff]
    %vm63 = vcmask 261120
    %v65 = vsel %vm63, %v57, 0
    %v68 = vsel %vm63, %v58, 0
    %70 = vmatprep.subr.mxu0 0.0
    %71 = vmatpush1.msra.mxu0 %v59
    %72 = vmatprep.subr.mxu0 0.0
    %73 = vmatpush1.msra.mxu0 %v60
    %74 = vmatprep.subr.mxu0 0.0
    %75 = vmatpush1.msra.mxu0 %v61
    %76 = vmatprep.subr.mxu0 0.0
    %77 = vmatpush1.msra.mxu0 %v62
    %78 = vmatprep.subr.mxu0 0.0
    %79 = vmatpush1.msra.mxu0 0.0
    %80 = vmatprep.subr.mxu0 0.0
    %81 = vmatpush1.msra.mxu0 0.0
    %82 = vmatprep.subr.mxu0 0.0
    %83 = vmatpush1.msra.mxu0 0.0
    %84 = vmatprep.subr.mxu0 0.0
    %85 = vmatpush1.msra.mxu0 0.0
    %86 = vmatprep.subr.mxu0 0.0
    %87 = vmatpush1.msra.mxu0 0.0
    %88 = vmatprep.subr.mxu0 0.0
    %89 = vmatpush1.msra.mxu0 0.0
    %90 = vmatprep.subr.mxu0 0.0
    %91 = vmatpush1.msra.mxu0 0.0
    %92 = vmatprep.subr.mxu0 0.0
    %93 = vmatpush1.msra.mxu0 0.0
    %94 = vmatprep.subr.mxu0 0.0
    %95 = vmatpush1.msra.mxu0 0.0
    %96 = vmatprep.subr.mxu0 0.0
    %97 = vmatpush1.msra.mxu0 0.0
    %98 = vmatprep.subr.mxu0 0.0
    %99 = vmatpush1.msra.mxu0 0.0
    %100 = vmatprep.subr.mxu0 0.0
    %101 = vmatpush1.msra.mxu0 0.0
    %102 = vmatprep.subr.mxu0 0.0
    %103 = vmatpush1.msra.mxu0 0.0
    %104 = vmatprep.subr.mxu0 0.0
    %105 = vmatpush1.msra.mxu0 0.0
    %106 = vmatprep.subr.mxu0 0.0
    %107 = vmatpush1.msra.mxu0 0.0
    %108 = vmatprep.subr.mxu0 0.0
    %109 = vmatpush1.msra.mxu0 0.0
    %110 = vmatprep.subr.mxu0 0.0
    %111 = vmatpush1.msra.mxu0 0.0
    %112 = vmatprep.subr.mxu0 0.0
    %113 = vmatpush1.msra.mxu0 0.0
    %114 = vmatprep.subr.mxu0 0.0
    %115 = vmatpush1.msra.mxu0 0.0
    %116 = vmatprep.subr.mxu0 0.0
    %117 = vmatpush1.msra.mxu0 0.0
    %118 = vmatprep.subr.mxu0 0.0
    %119 = vmatpush1.msra.mxu0 0.0
    %120 = vmatprep.subr.mxu0 0.0
    %121 = vmatpush1.msra.mxu0 0.0
    %122 = vmatprep.subr.mxu0 0.0
    %123 = vmatpush1.msra.mxu0 0.0
    %124 = vmatprep.subr.mxu0 0.0
    %125 = vmatpush1.msra.mxu0 0.0
    %126 = vmatprep.subr.mxu0 0.0
    %127 = vmatpush1.msra.mxu0 0.0
    %128 = vmatprep.subr.mxu0 0.0
    %129 = vmatpush1.msra.mxu0 0.0
    %130 = vmatprep.subr.mxu0 0.0
    %131 = vmatpush1.msra.mxu0 0.0
    %132 = vmatprep.subr.mxu0 0.0
    %133 = vmatpush1.msra.mxu0 0.0
    %134 = vmatprep.mubr.f32.mxu0 0.0
    %135 = vmatmul.mubr.f32.gmra.mrb[0].mxu0 %v65
    %v136 = vpop.f32.mrb[0].mxu0
    %v137 = vadd.f32 0.0, %v136
    %v138 = vpop.f32.mrb[0].mxu0
    %139 = vmatprep.mubr.f32.mxu0 0.0
    %140 = vmatmul.mubr.f32.gmra.mrb[0].mxu0 %v68
    %v141 = vpop.f32.mrb[0].mxu0
    %v142 = vadd.f32 0.0, %v141
    %v143 = vpop.f32.mrb[0].mxu0
    %144 = vdwg.mxu0
    %v145 = vld [vmem:[#allocation2] sm:$0x3]
    %v146 = vld [vmem:[%s3] sm:$0x1]
    %v149 = vunpack.c.l.s4 1966171168
    %v150 = vunpack.c.0.s8 %v149
    %v151 = vlaneseq
    %v152 = vshrl.u32 %v151, 7
    %v153 = vsub.s32 %v150, %v152
    %v154 = vrot.slane %v145, %v153
    %v155 = vcombine.high %v154, %v154
    %v157 = vunpack.c.l.s4 1966171168
    %v158 = vunpack.c.0.s8 %v157
    %v159 = vlaneseq
    %v160 = vshrl.u32 %v159, 7
    %v161 = vsub.s32 %v158, %v160
    %v162 = vrot.slane %v154, %v161
    %v164 = vunpack.c.l.s4 1966171168
    %v165 = vunpack.c.0.s8 %v164
    %v166 = vlaneseq
    %v167 = vshrl.u32 %v166, 7
    %v168 = vsub.s32 %v165, %v167
    %v169 = vrot.slane %v155, %v168
    %v170 = vlaneseq
    %v171 = vshrl.u32 %v170, 7
    %v172 = vsub.s32 0, %v171
    %v173 = vrot.slane %v162, %v172
    %v174 = vlaneseq
    %v175 = vshrl.u32 %v174, 7
    %v176 = vsub.s32 0, %v175
    %v177 = vrot.slane %v169, %v176
    %v180 = vadd.f32 %v137, %v173
    %v181 = vadd.f32 %v142, %v177
    %v182 = vtanh.pop %v180
    %v183 = vtanh.pop %v181
    %v185 = vlaneseq
    %v186 = vshrl.u32 %v185, 7
    %v187 = vsub.s32 0, %v186
    %v188 = vrot.slane %v146, %v187
    %v190 = vmul.f32 %v182, %v188
    %v191 = vmul.f32 %v183, %v188
    %v192 = vsel %vm63, %v190, 0.0
    %193 = vadd.xlane.f32.xlu0 %v192
    %v194 = vpop.xlane.xlu0 %193
    %v195 = vsel %vm63, %v191, 0.0
    %196 = vadd.xlane.f32.xlu0 %v195
    %v197 = vpop.xlane.xlu0 %196
    %v200 = vlaneseq
    %v201 = vand.u32 %v200, 127
    %v202 = vlaneseq
    %v203 = vshrl.u32 %v202, 7
    %v204 = vsub.s32 %v201, %v203
    %v205 = vrot.slane %v194, %v204
    %v206 = vlaneseq
    %v207 = vshrl.u32 %v206, 7
    %v208 = vsub.s32 %v201, %v207
    %v209 = vrot.slane %v197, %v208
    %vm210 = vcmask 1041409
    %v211 = vsel %vm210, %v209, %v205
    %vm213 = vcmask 58368
    %v214 = vsel %vm213, %v211, -inf
    %215 = vmax.xlane.f32.xlu0 %v214
    %v216 = vpop.xlane.xlu0 %215
    %v218 = vlaneseq
    %v219 = vshrl.u32 %v218, 7
    %v220 = vsub.s32 0, %v219
    %v221 = vrot.slane %v216, %v220
    %v222 = vlaneseq
    %v223 = vshrl.u32 %v222, 7
    %v224 = vsub.s32 1, %v223
    %v225 = vrot.slane %v216, %v224
    %v228 = vsub.f32 %v194, %v221
    %v229 = vsub.f32 %v197, %v225
    %v230 = vmul.f32 %v228, 1.442695
    %v231 = vpow.pop %v230
    %v232 = vmul.f32 %v229, 1.442695
    %v233 = vpow.pop %v232
    %236 = vset.pattern.permute.xlu0 0
    %237 = vperm.xlu0 %236, %v231
    %v238 = vpop.permute.xlu0 %237
    %239 = vset.pattern.permute.xlu0 0
    %240 = vperm.xlu0 %239, %v233
    %v241 = vpop.permute.xlu0 %240
    %v242 = vlaneseq
    %v243 = vshrl.u32 %v242, 7
    %v244 = vsub.s32 %v201, %v243
    %v245 = vrot.slane %v238, %v244
    %v246 = vlaneseq
    %v247 = vshrl.u32 %v246, 7
    %v248 = vsub.s32 %v201, %v247
    %v249 = vrot.slane %v241, %v248
    %v250 = vsel %vm210, %v249, %v245
    %v252 = vsel %vm213, %v250, 0.0
    %253 = vadd.xlane.f32.xlu0 %v252
    %v254 = vpop.xlane.xlu0 %253
    %v255 = vrcp.pop %v254
    %v257 = vlaneseq
    %v258 = vshrl.u32 %v257, 7
    %v259 = vsub.s32 0, %v258
    %v260 = vrot.slane %v255, %v259
    %v261 = vlaneseq
    %v262 = vshrl.u32 %v261, 7
    %v263 = vsub.s32 1, %v262
    %v264 = vrot.slane %v255, %v263
    %v267 = vmul.f32 %v231, %v260
    %v268 = vmul.f32 %v233, %v264
    %271 = vset.pattern.permute.xlu0 0
    %272 = vperm.xlu0 %271, %v267
    %v273 = vpop.permute.xlu0 %272
    %274 = vset.pattern.permute.xlu0 0
    %275 = vperm.xlu0 %274, %v268
    %v276 = vpop.permute.xlu0 %275
    %v277 = vlaneseq
    %v278 = vshrl.u32 %v277, 7
    %v279 = vsub.s32 %v201, %v278
    %v280 = vrot.slane %v273, %v279
    %v281 = vlaneseq
    %v282 = vshrl.u32 %v281, 7
    %v283 = vsub.s32 %v201, %v282
    %v284 = vrot.slane %v276, %v283
    %v285 = vsel %vm210, %v284, %v280
    %287 = vst.msk [vmem:[#allocation8] sm:$0x3] %vm213, %v285
    // Predicated region
    $region30: #{tpu_custom_call.1} parent=1 // pred_check
      _
    $region31: #{tpu_custom_call.1} parent=1 // pred_check_branch
      %289 = sbr.rel (0) target = $region33
    $region32: #{tpu_custom_call.1} parent=1 // pred_region
      %s291 = ssub.s32 32, 32
      %292 = vsyncadd [#allocation4], %s291
      %s294 = sshll.u32 [#allocation8], 4
      %s295 = int_to_ptr.vmem [resolvable:$true] %s294
      %297 = dma.vmem_to_hbm [thread:$0]  %s295, 32, %s4, [#allocation4]
    $region33: #{tpu_custom_call.1} parent=1 // pred_fallthru
      _
    // Predicated region
    $region34: #{tpu_custom_call.1} parent=1 // pred_check
      _
    $region35: #{tpu_custom_call.1} parent=1 // pred_check_branch
      %299 = sbr.rel (0) target = $region37
    $region36: #{tpu_custom_call.1} parent=1 // pred_region
      %300 = dma.done [#allocation4], 32
    $region37: #{tpu_custom_call.1} parent=1 // pred_fallthru
      _
    %301 = vsyncpa [#allocation3], 1
    %302 = vsyncpa [#allocation6], 1
    %303 = vsyncpa [#allocation4], 1

</llo_original>
